<compile_context>
chip_gen: v7x
topology: tpu7x:2x2x1
jax: 0.10.0
libtpu: 0.0.40
codegen_flags: <defaults>
</compile_context>

<pallas_src>
import math

import jax
import jax.numpy as jnp
from jax.experimental import pallas as pl
from jax.experimental.pallas import tpu as pltpu


# ----------------------------------------------------------------------------
# Pallas kernel: one (TG groups) x (TN series-lanes) block per grid step
# ----------------------------------------------------------------------------
def _ctxmap_kernel(x_ref, w_ref, b_ref, o_ref):
    """
    x_ref: (TG, CTX, TN)   per-group time-major tiles (native module layout)
    w_ref: (PRED, CTX)     Linear weight, resident across grid steps
    b_ref: (PRED, 1)       Linear bias (f32), resident across grid steps
    o_ref: (TG, PRED, TN)  output block, written in the module's native layout
    """
    w = w_ref[...]
    b = b_ref[...]                      # (PRED, 1) f32
    tg = x_ref.shape[0]

    def one_group(g):
        acc = jnp.dot(w, x_ref[g], preferred_element_type=jnp.float32)
        o_ref[g] = (acc + b).astype(o_ref.dtype)

    if tg <= 8:
        # Static unroll for tiny group blocks (LLO scheduler visibility).
        for g in range(tg):
            one_group(g)
    else:
        def body(g, carry):
            one_group(g)
            return carry

        jax.lax.fori_loop(0, tg, body, 0)


# ----------------------------------------------------------------------------
# wrapper: CtxMap.forward
# ----------------------------------------------------------------------------
def ctxmap_pallas(weight, bias, x, *, out_dtype=None,
                  vmem_budget_bytes=12 * 1024 * 1024,
                  step_bytes_target=4 * 1024 * 1024):
    """CtxMap forward.  x: (B, NF, CTX, NS) -> (B, NF, PRED, NS).

    weight: (PRED, CTX) from nn.Linear(context_length, prediction_length)
    bias:   (PRED,)
    Pass x (and weight) in bf16 from upstream to halve HBM traffic; accumulation
    and the bias add stay f32.  out_dtype defaults to x.dtype.
    """
    B, NF, CTX, NS = x.shape
    PRED, CTX_w = weight.shape
    assert CTX_w == CTX, "weight/input context_length mismatch"
    G = B * NF
    if out_dtype is None:
        out_dtype = x.dtype

    # Free reshapes only -- no HBM data movement in the wrapper.
    x3 = x.reshape(G, CTX, NS)
    w_in = weight if weight.dtype == x.dtype else weight.astype(x.dtype)
    b_in = bias.reshape(PRED, 1).astype(jnp.float32)

    in_bsz = jnp.dtype(x.dtype).itemsize
    out_bsz = jnp.dtype(out_dtype).itemsize
    w_bsz = jnp.dtype(w_in.dtype).itemsize

    def ceil_to(v, m):
        return -(-v // m) * m

    def largest_divisor_leq(n, cap):
        cap = max(1, min(n, cap))
        d = cap
        while n % d:
            d -= 1
        return d

    # Resident weight/bias VMEM (pipeline double-buffers them even with a
    # constant index_map; small enough that pl.Buffered(1) is not worth it).
    resident = 2 * (ceil_to(PRED, 8) * ceil_to(CTX, 128) * w_bsz
                    + ceil_to(PRED, 8) * 128 * 4)
    budget = max(1 << 20, vmem_budget_bytes - resident)

    # ---- lane tile TN (series axis) -------------------------------------
    per_lane_vmem = ceil_to(CTX, 8) * in_bsz + ceil_to(PRED, 8) * out_bsz
    per_lane_hbm = CTX * in_bsz + PRED * out_bsz
    if NS % 128 == 0:
        lane_cap = min(budget // (2 * per_lane_vmem),
                       max(1, step_bytes_target // per_lane_hbm))
        lane_cap = max(128, lane_cap // 128 * 128)
        TN = 128 * largest_divisor_leq(NS // 128, lane_cap // 128)
    else:
        TN = NS  # block last dim equals full array dim (BlockSpec rule)

    # ---- group tile TG (fused b*nf axis) ---------------------------------
    lane_pad = ceil_to(TN, 128)
    grp_vmem = per_lane_vmem * lane_pad          # one buffered copy, per group
    grp_hbm = per_lane_hbm * TN                  # actual HBM bytes, per group
    tg_cap = min(max(1, budget // (2 * grp_vmem)),
                 max(1, step_bytes_target // grp_hbm))
    if NS // TN < 2 and G > 1:
        # Keep >=2 grid steps: pipeline overlap + work for v7x's 2nd TensorCore.
        tg_cap = min(tg_cap, (G + 1) // 2)
    TG = largest_divisor_leq(G, tg_cap)

    grid = (G // TG, NS // TN)

    out3 = pl.pallas_call(
        _ctxmap_kernel,
        out_shape=jax.ShapeDtypeStruct((G, PRED, NS), out_dtype),
        grid=grid,
        in_specs=[
            pl.BlockSpec((TG, CTX, TN), lambda i, j: (i, 0, j)),   # streaming input
            pl.BlockSpec((PRED, CTX), lambda i, j: (0, 0)),        # resident weight
            pl.BlockSpec((PRED, 1), lambda i, j: (0, 0)),          # resident bias
        ],
        out_specs=pl.BlockSpec((TG, PRED, TN), lambda i, j: (i, 0, j)),
        compiler_params=pltpu.CompilerParams(
            dimension_semantics=("parallel", "parallel"),
            vmem_limit_bytes=32 * 1024 * 1024,   # explicit for v5e's 16 MiB default
        ),
    )(x3, w_in, b_in)

    # Free reshape back to the module's output layout.
    return out3.reshape(B, NF, PRED, NS)


# ----------------------------------------------------------------------------
# pure-JAX reference (mirrors the PyTorch module), for validation
# ----------------------------------------------------------------------------
def ctxmap_reference(weight, bias, x):
    return (jnp.einsum("ph,bfhn->bfpn",
                       weight.astype(jnp.float32), x.astype(jnp.float32))
            + bias.astype(jnp.float32)[None, None, :, None])


# ----------------------------------------------------------------------------
if __name__ == "__main__":
    key = jax.random.PRNGKey(0)
    kx, kw, kb, kx2, kx3 = jax.random.split(key, 5)

    # Primary toy config: x (B=2, NF=4, CTX=16, NS=16), Linear(16 -> 8).
    B, NF, CTX, NS, PRED = 2, 4, 16, 16, 8
    bound = 1.0 / math.sqrt(CTX)
    x = jax.random.normal(kx, (B, NF, CTX, NS), jnp.float32)
    w = jax.random.uniform(kw, (PRED, CTX), jnp.float32, -bound, bound)
    b = jax.random.uniform(kb, (PRED,), jnp.float32, -bound, bound)

    # f32 path, NS < 128 (native-layout, zero-transpose path).
    out = ctxmap_pallas(w, b, x)
    jax.block_until_ready(out)
    ref = ctxmap_reference(w, b, x)
    assert out.shape == (B, NF, PRED, NS)
    assert bool(jnp.allclose(out, ref, rtol=2e-3, atol=2e-3)), "f32 path mismatch"

    # Ragged NS (no padding anywhere in the wrapper).
    x2 = jax.random.normal(kx2, (2, 3, CTX, 5), jnp.float32)
    out2 = ctxmap_pallas(w, b, x2)
    jax.block_until_ready(out2)
    ref2 = ctxmap_reference(w, b, x2)
    assert out2.shape == (2, 3, PRED, 5)
    assert bool(jnp.allclose(out2, ref2, rtol=2e-3, atol=2e-3)), "ragged path mismatch"

    # Lane-dense production-style path (NS % 128 == 0).
    x3 = jax.random.normal(kx3, (2, 2, CTX, 128), jnp.float32)
    out3 = ctxmap_pallas(w, b, x3)
    jax.block_until_ready(out3)
    ref3 = ctxmap_reference(w, b, x3)
    assert out3.shape == (2, 2, PRED, 128)
    assert bool(jnp.allclose(out3, ref3, rtol=2e-3, atol=2e-3)), "lane-dense path mismatch"

    # bf16 path: cast UPSTREAM of the kernel call (halves the dominant HBM
    # stream; output emitted in bf16), f32 accumulation + bias kept in-kernel.
    x_bf = x.astype(jnp.bfloat16)
    w_bf = w.astype(jnp.bfloat16)
    out_bf = ctxmap_pallas(w_bf, b, x_bf)
    jax.block_until_ready(out_bf)
    ref_bf = ctxmap_reference(w_bf, b, x_bf)   # reference from the same bf16 inputs
    assert out_bf.dtype == jnp.bfloat16
    assert bool(jnp.allclose(out_bf.astype(jnp.float32), ref_bf,
                             rtol=2e-2, atol=2e-2)), "bf16 path mismatch"

    print("KERNEL_OK")
</pallas_src>

<mosaic_0001>
module attributes {stable_mosaic.version = 11 : i64} {
  func.func @_ctxmap_kernel(%arg0: i32, %arg1: i32, %arg2: memref<4x16x16xf32, #tpu.memory_space<vmem>>, %arg3: memref<8x16xf32, #tpu.memory_space<vmem>>, %arg4: memref<8x1xf32, #tpu.memory_space<vmem>>, %arg5: memref<4x8x16xf32, #tpu.memory_space<vmem>>) attributes {dimension_semantics = [#tpu.dimension_semantics<parallel>, #tpu.dimension_semantics<parallel>], iteration_bounds = array<i64: 2, 1>, scalar_prefetch = 0 : i64, scratch_operands = 0 : i64, tpu.core_type = #tpu.core_type<tc>, window_params = [{transform_indices = @transform_0, window_bounds = array<i64: 4, 16, 16>}, {pipeline_mode = #tpu.pipeline_mode<synchronous>, transform_indices = @transform_1, window_bounds = array<i64: 8, 16>}, {pipeline_mode = #tpu.pipeline_mode<synchronous>, transform_indices = @transform_2, window_bounds = array<i64: 8, 1>}, {transform_indices = @transform_3, window_bounds = array<i64: 4, 8, 16>}]} {
    %c0 = arith.constant 0 : index
    %c0_0 = arith.constant 0 : index
    %0 = vector.load %arg3[%c0, %c0_0] : memref<8x16xf32, #tpu.memory_space<vmem>>, vector<8x16xf32>
    %c0_1 = arith.constant 0 : index
    %c0_2 = arith.constant 0 : index
    %1 = vector.load %arg4[%c0_1, %c0_2] : memref<8x1xf32, #tpu.memory_space<vmem>>, vector<8x1xf32>
    %c0_3 = arith.constant 0 : index
    %c0_4 = arith.constant 0 : index
    %c0_5 = arith.constant 0 : index
    %2 = vector.load %arg2[%c0_3, %c0_4, %c0_5] : memref<4x16x16xf32, #tpu.memory_space<vmem>>, vector<1x16x16xf32>
    %3 = vector.shape_cast %2 : vector<1x16x16xf32> to vector<16x16xf32>
    %cst = arith.constant dense<0.000000e+00> : vector<8x16xf32>
    %4 = tpu.matmul %0, %3, %cst {dimension_numbers = #tpu.dot_dimension_numbers<[1], [0], [0], [1], [0, 0, 1, 1], [], []>} : vector<8x16xf32>, vector<16x16xf32>, vector<8x16xf32> -> vector<8x16xf32>
    %5 = vector.broadcast %1 : vector<8x1xf32> to vector<8x16xf32>
    %6 = arith.addf %4, %5 : vector<8x16xf32>
    %c0_6 = arith.constant 0 : index
    %c0_7 = arith.constant 0 : index
    %c0_8 = arith.constant 0 : index
    %7 = vector.load %arg5[%c0_6, %c0_7, %c0_8] : memref<4x8x16xf32, #tpu.memory_space<vmem>>, vector<1x8x16xf32>
    %8 = vector.shape_cast %7 : vector<1x8x16xf32> to vector<8x16xf32>
    %9 = vector.shape_cast %6 : vector<8x16xf32> to vector<1x8x16xf32>
    tpu.vector_store %arg5[%c0_6, %c0_7, %c0_8], %9 {strides = array<i32>} : memref<4x8x16xf32, #tpu.memory_space<vmem>>, vector<1x8x16xf32>,
    %c1 = arith.constant 1 : index
    %c0_9 = arith.constant 0 : index
    %c0_10 = arith.constant 0 : index
    %10 = vector.load %arg2[%c1, %c0_9, %c0_10] : memref<4x16x16xf32, #tpu.memory_space<vmem>>, vector<1x16x16xf32>
    %11 = vector.shape_cast %10 : vector<1x16x16xf32> to vector<16x16xf32>
    %cst_11 = arith.constant dense<0.000000e+00> : vector<8x16xf32>
    %12 = tpu.matmul %0, %11, %cst_11 {dimension_numbers = #tpu.dot_dimension_numbers<[1], [0], [0], [1], [0, 0, 1, 1], [], []>} : vector<8x16xf32>, vector<16x16xf32>, vector<8x16xf32> -> vector<8x16xf32>
    %13 = vector.broadcast %1 : vector<8x1xf32> to vector<8x16xf32>
    %14 = arith.addf %12, %13 : vector<8x16xf32>
    %c1_12 = arith.constant 1 : index
    %c0_13 = arith.constant 0 : index
    %c0_14 = arith.constant 0 : index
    %15 = vector.load %arg5[%c1_12, %c0_13, %c0_14] : memref<4x8x16xf32, #tpu.memory_space<vmem>>, vector<1x8x16xf32>
    %16 = vector.shape_cast %15 : vector<1x8x16xf32> to vector<8x16xf32>
    %17 = vector.shape_cast %14 : vector<8x16xf32> to vector<1x8x16xf32>
    tpu.vector_store %arg5[%c1_12, %c0_13, %c0_14], %17 {strides = array<i32>} : memref<4x8x16xf32, #tpu.memory_space<vmem>>, vector<1x8x16xf32>,
    %c2 = arith.constant 2 : index
    %c0_15 = arith.constant 0 : index
    %c0_16 = arith.constant 0 : index
    %18 = vector.load %arg2[%c2, %c0_15, %c0_16] : memref<4x16x16xf32, #tpu.memory_space<vmem>>, vector<1x16x16xf32>
    %19 = vector.shape_cast %18 : vector<1x16x16xf32> to vector<16x16xf32>
    %cst_17 = arith.constant dense<0.000000e+00> : vector<8x16xf32>
    %20 = tpu.matmul %0, %19, %cst_17 {dimension_numbers = #tpu.dot_dimension_numbers<[1], [0], [0], [1], [0, 0, 1, 1], [], []>} : vector<8x16xf32>, vector<16x16xf32>, vector<8x16xf32> -> vector<8x16xf32>
    %21 = vector.broadcast %1 : vector<8x1xf32> to vector<8x16xf32>
    %22 = arith.addf %20, %21 : vector<8x16xf32>
    %c2_18 = arith.constant 2 : index
    %c0_19 = arith.constant 0 : index
    %c0_20 = arith.constant 0 : index
    %23 = vector.load %arg5[%c2_18, %c0_19, %c0_20] : memref<4x8x16xf32, #tpu.memory_space<vmem>>, vector<1x8x16xf32>
    %24 = vector.shape_cast %23 : vector<1x8x16xf32> to vector<8x16xf32>
    %25 = vector.shape_cast %22 : vector<8x16xf32> to vector<1x8x16xf32>
    tpu.vector_store %arg5[%c2_18, %c0_19, %c0_20], %25 {strides = array<i32>} : memref<4x8x16xf32, #tpu.memory_space<vmem>>, vector<1x8x16xf32>,
    %c3 = arith.constant 3 : index
    %c0_21 = arith.constant 0 : index
    %c0_22 = arith.constant 0 : index
    %26 = vector.load %arg2[%c3, %c0_21, %c0_22] : memref<4x16x16xf32, #tpu.memory_space<vmem>>, vector<1x16x16xf32>
    %27 = vector.shape_cast %26 : vector<1x16x16xf32> to vector<16x16xf32>
    %cst_23 = arith.constant dense<0.000000e+00> : vector<8x16xf32>
    %28 = tpu.matmul %0, %27, %cst_23 {dimension_numbers = #tpu.dot_dimension_numbers<[1], [0], [0], [1], [0, 0, 1, 1], [], []>} : vector<8x16xf32>, vector<16x16xf32>, vector<8x16xf32> -> vector<8x16xf32>
    %29 = vector.broadcast %1 : vector<8x1xf32> to vector<8x16xf32>
    %30 = arith.addf %28, %29 : vector<8x16xf32>
    %c3_24 = arith.constant 3 : index
    %c0_25 = arith.constant 0 : index
    %c0_26 = arith.constant 0 : index
    %31 = vector.load %arg5[%c3_24, %c0_25, %c0_26] : memref<4x8x16xf32, #tpu.memory_space<vmem>>, vector<1x8x16xf32>
    %32 = vector.shape_cast %31 : vector<1x8x16xf32> to vector<8x16xf32>
    %33 = vector.shape_cast %30 : vector<8x16xf32> to vector<1x8x16xf32>
    tpu.vector_store %arg5[%c3_24, %c0_25, %c0_26], %33 {strides = array<i32>} : memref<4x8x16xf32, #tpu.memory_space<vmem>>, vector<1x8x16xf32>,
    return
  }
  func.func @transform_0(%arg0: i32, %arg1: i32) -> (i32, i32, i32) {
    %c0_i32 = arith.constant 0 : i32
    %c0_i32_0 = arith.constant 0 : i32
    return %arg0, %c0_i32, %arg1 : i32, i32, i32
  }
  func.func @transform_1(%arg0: i32, %arg1: i32) -> (i32, i32) {
    %c0_i32 = arith.constant 0 : i32
    %c0_i32_0 = arith.constant 0 : i32
    %c0_i32_1 = arith.constant 0 : i32
    return %c0_i32, %c0_i32_0 : i32, i32
  }
  func.func @transform_2(%arg0: i32, %arg1: i32) -> (i32, i32) {
    %c0_i32 = arith.constant 0 : i32
    %c0_i32_0 = arith.constant 0 : i32
    %c0_i32_1 = arith.constant 0 : i32
    return %c0_i32, %c0_i32_0 : i32, i32
  }
  func.func @transform_3(%arg0: i32, %arg1: i32) -> (i32, i32, i32) {
    %c0_i32 = arith.constant 0 : i32
    %c0_i32_0 = arith.constant 0 : i32
    return %arg0, %c0_i32, %arg1 : i32, i32, i32
  }
}

</mosaic_0001>

<llo_original>
// kernel: tpu_custom_call.1
$region0: #{tpu_custom_call.1}
  #allocation0 [shape = 'u32[]', space=smem, size = 0x4, offset = 0x4, fixed_abs, tag = 'smem constant byte address 0x4 - core index']
  #allocation1 [shape = 'u32[144,128]{1,0:T(1,128)}', space=vmem, size = 0x12000, scoped, tag = 'internal scratch']
  %s0 = inlined_call_operand.hbm [shape: f32[8,16,16], index: 0, kind: input, shape index: {}]
  %s1 = inlined_call_operand.vmem [shape: f32[8,16], index: 1, kind: input, shape index: {}]
  %s2 = inlined_call_operand.vmem [shape: f32[8,1], index: 2, kind: input, shape index: {}]
  %s3 = inlined_call_operand.hbm [shape: f32[8,8,16], index: 3, kind: output, shape index: {}]
  %s4 = sld [smem:[#allocation0]]
  $region49: #{tpu_custom_call.1} parent=0
    _
  %s6 = ssub.s32 1, %s4
  %s7 = scalar_select 0, %s6, %s4
  $region1: #{tpu_custom_call.1} parent=0
    #allocation2 [shape = 'u8[65536]{0}', space=vmem, size = 0x10000, scoped, tag = 'input window, operand 0']
    #allocation3 [shape = 's32[2]{0}', space=sflag, size = 0x8, scoped, tag = 'scoped memory for tpu_custom_call.1']
    #allocation4 [shape = 's32[2]{0}', space=sflag, size = 0x8, scoped, tag = 'scoped memory for tpu_custom_call.1']
    #allocation5 [shape = 'u8[32768]{0}', space=vmem, size = 0x8000, scoped, tag = 'output window, operand 0']
    %8 = vsyncpa [#allocation3], 0
    %s9 = scalar_lea.sflag [#allocation3], 1
    %10 = vsyncpa %s9, 0
    %11 = vsyncpa [#allocation4], 0
    %s12 = scalar_lea.sflag [#allocation4], 1
    %13 = vsyncpa %s12, 0
    loop: start=0, step=1, limit=4
    $region2: #{tpu_custom_call.1} parent=1 // loop_pre_header
      _
    $region3: #{tpu_custom_call.1} parent=1 // loop_header
      %s15 = sphi 0, %s19
      %p16 = scmp.ge.s32.totalorder %s15, 4
      %s22 = sphi 0, %s34
      %s23 = sphi 0, %s30
      %s24 = sphi 0, %s22
      %s25 = sphi 0, %s23
      %s26 = sphi 0, %s24
      %s27 = sphi 0, %s25
      %s39 = sphi 0, %s41
      %s42 = sphi 0, %s39
      %s43 = sphi 0, %s42
      %s59 = sphi 0, %s43
      %s63 = sphi 0, %s63
      %s65 = sphi 0, %s63
      %s66 = sphi 0, %s65
      %s80 = sphi 0, %s66
      %s84 = sphi 0, %s84
      %s86 = sphi 0, %s84
      %s87 = sphi 0, %s86
      %s101 = sphi 0, %s87
      %s109 = sphi 0, %s111
      %s112 = sphi 0, %s109
      %s113 = sphi 0, %s112
      %s129 = sphi 0, %s113
    $region4: #{tpu_custom_call.1} parent=1 // loop_header_branch
      %18 = sbr.rel (%p16) target = $region8
    $region5: #{tpu_custom_call.1} parent=1 // loop_body
      %s20 = ssub.s32 %s15, 1
      %s21 = ssub.s32 %s15, 2
      %s28 = sadd.s32 1, %s23
      %p29 = scmp.ge.s32.totalorder %s28, 1
      %s30 = scalar_select %p29, 0, %s28
      %s31 = sadd.s32 1, %s22
      %s32 = scalar_select %p29, %s31, %s22
      %p33 = scmp.ge.s32.totalorder %s32, 2
      %s34 = scalar_select %p33, 0, %s32
      %s35 = ssub.s32 %s22, %s34
      %s36 = ssub.s32 %s23, %s30
      %s37 = sor.u32 %s35, %s36
      %p38 = scmp.eq.s32.totalorder %s37, 0
      %s40 = sadd.s32 %s39, 1
      %s41 = scalar_select %p38, %s39, %s40
      %p44 = pneg %p38
      %p45 = scmp.eq.s32.totalorder %s15, 1
      %p46 = por %p44, %p45
      %p47 = scmp.ne.s32.totalorder %s39, %s42
      %p48 = scmp.eq.s32.totalorder %s15, 0
      %p49 = por %p47, %p48
      %p50 = scmp.ne.s32.totalorder %s39, %s42
      %p51 = scmp.eq.s32.totalorder %s20, 1
      %p52 = por %p50, %p51
      %p53 = scmp.ne.s32.totalorder %s42, %s43
      %p54 = scmp.eq.s32.totalorder %s20, 0
      %p55 = por %p53, %p54
      %p56 = scmp.ne.s32.totalorder %s42, %s43
      %p57 = scmp.eq.s32.totalorder %s21, 1
      %p58 = por %p56, %p57
      %p60 = scmp.ne.s32.totalorder %s43, %s59
      %p61 = scmp.eq.s32.totalorder %s21, 0
      %p62 = por %p60, %p61
      %s64 = sadd.s32 %s63, 1
      %p67 = scmp.eq.s32.totalorder %s15, 1
      %p68 = scmp.ne.s32.totalorder %s63, %s65
      %p69 = scmp.eq.s32.totalorder %s15, 0
      %p70 = por %p68, %p69
      %p71 = scmp.ne.s32.totalorder %s63, %s65
      %p72 = scmp.eq.s32.totalorder %s20, 1
      %p73 = por %p71, %p72
      %p74 = scmp.ne.s32.totalorder %s65, %s66
      %p75 = scmp.eq.s32.totalorder %s20, 0
      %p76 = por %p74, %p75
      %p77 = scmp.ne.s32.totalorder %s65, %s66
      %p78 = scmp.eq.s32.totalorder %s21, 1
      %p79 = por %p77, %p78
      %p81 = scmp.ne.s32.totalorder %s66, %s80
      %p82 = scmp.eq.s32.totalorder %s21, 0
      %p83 = por %p81, %p82
      %s85 = sadd.s32 %s84, 1
      %p88 = scmp.eq.s32.totalorder %s15, 1
      %p89 = scmp.ne.s32.totalorder %s84, %s86
      %p90 = scmp.eq.s32.totalorder %s15, 0
      %p91 = por %p89, %p90
      %p92 = scmp.ne.s32.totalorder %s84, %s86
      %p93 = scmp.eq.s32.totalorder %s20, 1
      %p94 = por %p92, %p93
      %p95 = scmp.ne.s32.totalorder %s86, %s87
      %p96 = scmp.eq.s32.totalorder %s20, 0
      %p97 = por %p95, %p96
      %p98 = scmp.ne.s32.totalorder %s86, %s87
      %p99 = scmp.eq.s32.totalorder %s21, 1
      %p100 = por %p98, %p99
      %p102 = scmp.ne.s32.totalorder %s87, %s101
      %p103 = scmp.eq.s32.totalorder %s21, 0
      %p104 = por %p102, %p103
      %s105 = ssub.s32 %s22, %s34
      %s106 = ssub.s32 %s23, %s30
      %s107 = sor.u32 %s105, %s106
      %p108 = scmp.eq.s32.totalorder %s107, 0
      %s110 = sadd.s32 %s109, 1
      %s111 = scalar_select %p108, %s109, %s110
      %p114 = pneg %p108
      %p115 = scmp.eq.s32.totalorder %s15, 1
      %p116 = por %p114, %p115
      %p117 = scmp.ne.s32.totalorder %s109, %s112
      %p118 = scmp.eq.s32.totalorder %s15, 0
      %p119 = por %p117, %p118
      %p120 = scmp.ne.s32.totalorder %s109, %s112
      %p121 = scmp.eq.s32.totalorder %s20, 1
      %p122 = por %p120, %p121
      %p123 = scmp.ne.s32.totalorder %s112, %s113
      %p124 = scmp.eq.s32.totalorder %s20, 0
      %p125 = por %p123, %p124
      %p126 = scmp.ne.s32.totalorder %s112, %s113
      %p127 = scmp.eq.s32.totalorder %s21, 1
      %p128 = por %p126, %p127
      %p130 = scmp.ne.s32.totalorder %s113, %s129
      %p131 = scmp.eq.s32.totalorder %s21, 0
      %p132 = por %p130, %p131
      %p133 = scmp.le.s32.totalorder 1, %s15
      %p134 = scmp.lt.s32.totalorder %s15, 3
      %p135 = pnand %p133, %p134
      %p136 = pneg %p135
      // Predicated region
      $region9: #{tpu_custom_call.1} parent=5 // pred_check
        _
      $region10: #{tpu_custom_call.1} parent=5 // pred_check_branch
        %138 = sbr.rel (%p135) target = $region12
      $region11: #{tpu_custom_call.1} parent=5 // pred_region
        %s139 = ssub.s32 %s15, 1
        // Predicated region
        $region13: #{tpu_custom_call.1} parent=11 // pred_check
          %p140 = pneg %p76
        $region14: #{tpu_custom_call.1} parent=11 // pred_check_branch
          %142 = sbr.rel (%p140) target = $region16
        $region15: #{tpu_custom_call.1} parent=11 // pred_region
          _
        $region16: #{tpu_custom_call.1} parent=11 // pred_fallthru
          _
        // Predicated region
        $region17: #{tpu_custom_call.1} parent=11 // pred_check
          %p143 = pneg %p97
        $region18: #{tpu_custom_call.1} parent=11 // pred_check_branch
          %145 = sbr.rel (%p143) target = $region20
        $region19: #{tpu_custom_call.1} parent=11 // pred_region
          _
        $region20: #{tpu_custom_call.1} parent=11 // pred_fallthru
          _
      $region12: #{tpu_custom_call.1} parent=5 // pred_fallthru
        _
      %p146 = scmp.lt.s32.totalorder %s15, 2
      // Predicated region
      $region21: #{tpu_custom_call.1} parent=5 // pred_check
        %p147 = pneg %p146
      $region22: #{tpu_custom_call.1} parent=5 // pred_check_branch
        %149 = sbr.rel (%p147) target = $region24
      $region23: #{tpu_custom_call.1} parent=5 // pred_region
        // Predicated region
        $region25: #{tpu_custom_call.1} parent=23 // pred_check
          %p150 = pneg %p49
        $region26: #{tpu_custom_call.1} parent=23 // pred_check_branch
          %152 = sbr.rel (%p150) target = $region28
        $region27: #{tpu_custom_call.1} parent=23 // pred_region
          %s153 = sand.u32 %s39, 1
          %s154 = scalar_lea.sflag [#allocation3], %s153
          %s155 = sand.u32 %s39, 1
          %s156 = smul.addr %s155, 64
          %s157 = scalar_lea.vmem [#allocation2], %s156
          %s158 = smul.u32 4, %s22
          %s160 = ssub.s32 1024, 1024
          %161 = vsyncadd %s154, %s160
          %s162 = smul.addr %s158, 2
          %s163 = sadd.s32 %s23, %s162
          %s164 = smul.addr %s163, 128
          %s165 = scalar_lea.hbm %s0, %s164
          %s166 = sshll.u32 %s157, 4
          %s167 = int_to_ptr.vmem [resolvable:$true] %s166
          %172 = dma.hbm_to_vmem [thread:$0]  %s165, 1024, %s167, %s154, 128, 128, 8
        $region28: #{tpu_custom_call.1} parent=23 // pred_fallthru
          _
      $region24: #{tpu_custom_call.1} parent=5 // pred_fallthru
        _
      %p173 = scmp.le.s32.totalorder 1, %s15
      %p174 = scmp.lt.s32.totalorder %s15, 3
      %p175 = pnand %p173, %p174
      %p176 = pneg %p175
      // Predicated region
      $region29: #{tpu_custom_call.1} parent=5 // pred_check
        _
      $region30: #{tpu_custom_call.1} parent=5 // pred_check_branch
        %178 = sbr.rel (%p175) target = $region32
      $region31: #{tpu_custom_call.1} parent=5 // pred_region
        %s179 = ssub.s32 %s15, 1
        %s180 = sand.u32 %s42, 1
        %s181 = scalar_lea.sflag [#allocation3], %s180
        %s182 = sand.u32 %s42, 1
        %s183 = smul.addr %s182, 64
        %s184 = scalar_lea.vmem [#allocation2], %s183
        // Predicated region
        $region33: #{tpu_custom_call.1} parent=31 // pred_check
          %p185 = pneg %p55
        $region34: #{tpu_custom_call.1} parent=31 // pred_check_branch
          %187 = sbr.rel (%p185) target = $region36
        $region35: #{tpu_custom_call.1} parent=31 // pred_region
          %188 = dma.done %s181, 1024
        $region36: #{tpu_custom_call.1} parent=31 // pred_fallthru
          _
        %s189 = sand.u32 %s42, 1
        %s190 = scalar_lea.sflag [#allocation3], %s189
        %s191 = sand.u32 %s42, 1
        %s192 = smul.addr %s191, 64
        %s193 = scalar_lea.vmem [#allocation2], %s192
        %p194 = pneg %p55
        %p195 = pneg %p52
        %p196 = pneg %p76
        %p197 = pneg %p73
        %p198 = pneg %p97
        %p199 = pneg %p94
        %p200 = pneg %p125
        %p201 = pneg %p122
        %s202 = sand.u32 %s112, 1
        %s203 = scalar_lea.sflag [#allocation4], %s202
        %s204 = sand.u32 %s112, 1
        %s205 = smul.addr %s204, 32
        %s206 = scalar_lea.vmem [#allocation5], %s205
        %s207 = smul.u32 4, %s24
        %s208 = smul.u32 4, %s24
        %v209 = vld [vmem:[%s1] sm:$0xff]
        %v210 = vld [vmem:[%s2] sm:$0xff]
        %v211 = vld [vmem:[%s184] sm:$0xff]
        %v212 = vld [vmem:[%s184 + $0x8] sm:$0xff]
        %214 = vset.pattern.permute.xlu0 0
        %215 = vperm.xlu0 %214, %v210
        %v216 = vpop.permute.xlu0 %215
        %vm218 = vcmask 130048
        %v220 = vsel %vm218, %v209, 0
        %222 = vmatprep.subr.mxu0 0.0
        %223 = vmatpush1.msra.mxu0 %v211
        %224 = vmatprep.subr.mxu0 0.0
        %225 = vmatpush1.msra.mxu0 %v212
        %226 = vmatprep.subr.mxu0 0.0
        %227 = vmatpush1.msra.mxu0 0.0
        %228 = vmatprep.subr.mxu0 0.0
        %229 = vmatpush1.msra.mxu0 0.0
        %230 = vmatprep.subr.mxu0 0.0
        %231 = vmatpush1.msra.mxu0 0.0
        %232 = vmatprep.subr.mxu0 0.0
        %233 = vmatpush1.msra.mxu0 0.0
        %234 = vmatprep.subr.mxu0 0.0
        %235 = vmatpush1.msra.mxu0 0.0
        %236 = vmatprep.subr.mxu0 0.0
        %237 = vmatpush1.msra.mxu0 0.0
        %238 = vmatprep.subr.mxu0 0.0
        %239 = vmatpush1.msra.mxu0 0.0
        %240 = vmatprep.subr.mxu0 0.0
        %241 = vmatpush1.msra.mxu0 0.0
        %242 = vmatprep.subr.mxu0 0.0
        %243 = vmatpush1.msra.mxu0 0.0
        %244 = vmatprep.subr.mxu0 0.0
        %245 = vmatpush1.msra.mxu0 0.0
        %246 = vmatprep.subr.mxu0 0.0
        %247 = vmatpush1.msra.mxu0 0.0
        %248 = vmatprep.subr.mxu0 0.0
        %249 = vmatpush1.msra.mxu0 0.0
        %250 = vmatprep.subr.mxu0 0.0
        %251 = vmatpush1.msra.mxu0 0.0
        %252 = vmatprep.subr.mxu0 0.0
        %253 = vmatpush1.msra.mxu0 0.0
        %254 = vmatprep.subr.mxu0 0.0
        %255 = vmatpush1.msra.mxu0 0.0
        %256 = vmatprep.subr.mxu0 0.0
        %257 = vmatpush1.msra.mxu0 0.0
        %258 = vmatprep.subr.mxu0 0.0
        %259 = vmatpush1.msra.mxu0 0.0
        %260 = vmatprep.subr.mxu0 0.0
        %261 = vmatpush1.msra.mxu0 0.0
        %262 = vmatprep.subr.mxu0 0.0
        %263 = vmatpush1.msra.mxu0 0.0
        %264 = vmatprep.subr.mxu0 0.0
        %265 = vmatpush1.msra.mxu0 0.0
        %266 = vmatprep.subr.mxu0 0.0
        %267 = vmatpush1.msra.mxu0 0.0
        %268 = vmatprep.subr.mxu0 0.0
        %269 = vmatpush1.msra.mxu0 0.0
        %270 = vmatprep.subr.mxu0 0.0
        %271 = vmatpush1.msra.mxu0 0.0
        %272 = vmatprep.subr.mxu0 0.0
        %273 = vmatpush1.msra.mxu0 0.0
        %274 = vmatprep.subr.mxu0 0.0
        %275 = vmatpush1.msra.mxu0 0.0
        %276 = vmatprep.subr.mxu0 0.0
        %277 = vmatpush1.msra.mxu0 0.0
        %278 = vmatprep.subr.mxu0 0.0
        %279 = vmatpush1.msra.mxu0 0.0
        %280 = vmatprep.subr.mxu0 0.0
        %281 = vmatpush1.msra.mxu0 0.0
        %282 = vmatprep.subr.mxu0 0.0
        %283 = vmatpush1.msra.mxu0 0.0
        %284 = vmatprep.subr.mxu0 0.0
        %285 = vmatpush1.msra.mxu0 0.0
        %286 = vmatprep.mubr.f32.mxu0 0.0
        %287 = vmatmul.mubr.f32.gmra.mrb[0].mxu0 %v220
        %v288 = vpop.f32.mrb[0].mxu0
        %v289 = vadd.f32 %v216, %v288
        %v290 = vpop.f32.mrb[0].mxu0
        %291 = vdwg.mxu0
        %292 = vst.msk [vmem:[%s206] sm:$0xff] %vm218, %v289
        %s293 = scalar_lea.vmem %s184, 16 [#allocation2]
        %v294 = vld [vmem:[%s293] sm:$0xff]
        %v295 = vld [vmem:[%s293 + $0x8] sm:$0xff]
        %296 = vmatprep.subr.mxu0 0.0
        %297 = vmatpush1.msra.mxu0 %v294
        %298 = vmatprep.subr.mxu0 0.0
        %299 = vmatpush1.msra.mxu0 %v295
        %300 = vmatprep.subr.mxu0 0.0
        %301 = vmatpush1.msra.mxu0 0.0
        %302 = vmatprep.subr.mxu0 0.0
        %303 = vmatpush1.msra.mxu0 0.0
        %304 = vmatprep.subr.mxu0 0.0
        %305 = vmatpush1.msra.mxu0 0.0
        %306 = vmatprep.subr.mxu0 0.0
        %307 = vmatpush1.msra.mxu0 0.0
        %308 = vmatprep.subr.mxu0 0.0
        %309 = vmatpush1.msra.mxu0 0.0
        %310 = vmatprep.subr.mxu0 0.0
        %311 = vmatpush1.msra.mxu0 0.0
        %312 = vmatprep.subr.mxu0 0.0
        %313 = vmatpush1.msra.mxu0 0.0
        %314 = vmatprep.subr.mxu0 0.0
        %315 = vmatpush1.msra.mxu0 0.0
        %316 = vmatprep.subr.mxu0 0.0
        %317 = vmatpush1.msra.mxu0 0.0
        %318 = vmatprep.subr.mxu0 0.0
        %319 = vmatpush1.msra.mxu0 0.0
        %320 = vmatprep.subr.mxu0 0.0
        %321 = vmatpush1.msra.mxu0 0.0
        %322 = vmatprep.subr.mxu0 0.0
        %323 = vmatpush1.msra.mxu0 0.0
        %324 = vmatprep.subr.mxu0 0.0
        %325 = vmatpush1.msra.mxu0 0.0
        %326 = vmatprep.subr.mxu0 0.0
        %327 = vmatpush1.msra.mxu0 0.0
        %328 = vmatprep.subr.mxu0 0.0
        %329 = vmatpush1.msra.mxu0 0.0
        %330 = vmatprep.subr.mxu0 0.0
        %331 = vmatpush1.msra.mxu0 0.0
        %332 = vmatprep.subr.mxu0 0.0
        %333 = vmatpush1.msra.mxu0 0.0
        %334 = vmatprep.subr.mxu0 0.0
        %335 = vmatpush1.msra.mxu0 0.0
        %336 = vmatprep.subr.mxu0 0.0
        %337 = vmatpush1.msra.mxu0 0.0
        %338 = vmatprep.subr.mxu0 0.0
        %339 = vmatpush1.msra.mxu0 0.0
        %340 = vmatprep.subr.mxu0 0.0
        %341 = vmatpush1.msra.mxu0 0.0
        %342 = vmatprep.subr.mxu0 0.0
        %343 = vmatpush1.msra.mxu0 0.0
        %344 = vmatprep.subr.mxu0 0.0
        %345 = vmatpush1.msra.mxu0 0.0
        %346 = vmatprep.subr.mxu0 0.0
        %347 = vmatpush1.msra.mxu0 0.0
        %348 = vmatprep.subr.mxu0 0.0
        %349 = vmatpush1.msra.mxu0 0.0
        %350 = vmatprep.subr.mxu0 0.0
        %351 = vmatpush1.msra.mxu0 0.0
        %352 = vmatprep.subr.mxu0 0.0
        %353 = vmatpush1.msra.mxu0 0.0
        %354 = vmatprep.subr.mxu0 0.0
        %355 = vmatpush1.msra.mxu0 0.0
        %356 = vmatprep.subr.mxu0 0.0
        %357 = vmatpush1.msra.mxu0 0.0
        %358 = vmatprep.subr.mxu0 0.0
        %359 = vmatpush1.msra.mxu0 0.0
        %360 = vmatprep.mubr.f32.mxu0 0.0
        %361 = vmatmul.mubr.f32.gmra.mrb[0].mxu0 %v220
        %v362 = vpop.f32.mrb[0].mxu0
        %v363 = vadd.f32 %v216, %v362
        %v364 = vpop.f32.mrb[0].mxu0
        %365 = vdwg.mxu0
        %s366 = scalar_lea.vmem %s206, 8 [#allocation5]
        %367 = vst.msk [vmem:[%s366] sm:$0xff] %vm218, %v363
        %s368 = scalar_lea.vmem %s184, 32 [#allocation2]
        %v369 = vld [vmem:[%s368] sm:$0xff]
        %v370 = vld [vmem:[%s368 + $0x8] sm:$0xff]
        %371 = vmatprep.subr.mxu0 0.0
        %372 = vmatpush1.msra.mxu0 %v369
        %373 = vmatprep.subr.mxu0 0.0
        %374 = vmatpush1.msra.mxu0 %v370
        %375 = vmatprep.subr.mxu0 0.0
        %376 = vmatpush1.msra.mxu0 0.0
        %377 = vmatprep.subr.mxu0 0.0
        %378 = vmatpush1.msra.mxu0 0.0
        %379 = vmatprep.subr.mxu0 0.0
        %380 = vmatpush1.msra.mxu0 0.0
        %381 = vmatprep.subr.mxu0 0.0
        %382 = vmatpush1.msra.mxu0 0.0
        %383 = vmatprep.subr.mxu0 0.0
        %384 = vmatpush1.msra.mxu0 0.0
        %385 = vmatprep.subr.mxu0 0.0
        %386 = vmatpush1.msra.mxu0 0.0
        %387 = vmatprep.subr.mxu0 0.0
        %388 = vmatpush1.msra.mxu0 0.0
        %389 = vmatprep.subr.mxu0 0.0
        %390 = vmatpush1.msra.mxu0 0.0
        %391 = vmatprep.subr.mxu0 0.0
        %392 = vmatpush1.msra.mxu0 0.0
        %393 = vmatprep.subr.mxu0 0.0
        %394 = vmatpush1.msra.mxu0 0.0
        %395 = vmatprep.subr.mxu0 0.0
        %396 = vmatpush1.msra.mxu0 0.0
        %397 = vmatprep.subr.mxu0 0.0
        %398 = vmatpush1.msra.mxu0 0.0
        %399 = vmatprep.subr.mxu0 0.0
        %400 = vmatpush1.msra.mxu0 0.0
        %401 = vmatprep.subr.mxu0 0.0
        %402 = vmatpush1.msra.mxu0 0.0
        %403 = vmatprep.subr.mxu0 0.0
        %404 = vmatpush1.msra.mxu0 0.0
        %405 = vmatprep.subr.mxu0 0.0
        %406 = vmatpush1.msra.mxu0 0.0
        %407 = vmatprep.subr.mxu0 0.0
        %408 = vmatpush1.msra.mxu0 0.0
        %409 = vmatprep.subr.mxu0 0.0
        %410 = vmatpush1.msra.mxu0 0.0
        %411 = vmatprep.subr.mxu0 0.0
        %412 = vmatpush1.msra.mxu0 0.0
        %413 = vmatprep.subr.mxu0 0.0
        %414 = vmatpush1.msra.mxu0 0.0
        %415 = vmatprep.subr.mxu0 0.0
        %416 = vmatpush1.msra.mxu0 0.0
        %417 = vmatprep.subr.mxu0 0.0
        %418 = vmatpush1.msra.mxu0 0.0
        %419 = vmatprep.subr.mxu0 0.0
        %420 = vmatpush1.msra.mxu0 0.0
        %421 = vmatprep.subr.mxu0 0.0
        %422 = vmatpush1.msra.mxu0 0.0
        %423 = vmatprep.subr.mxu0 0.0
        %424 = vmatpush1.msra.mxu0 0.0
        %425 = vmatprep.subr.mxu0 0.0
        %426 = vmatpush1.msra.mxu0 0.0
        %427 = vmatprep.subr.mxu0 0.0
        %428 = vmatpush1.msra.mxu0 0.0
        %429 = vmatprep.subr.mxu0 0.0
        %430 = vmatpush1.msra.mxu0 0.0
        %431 = vmatprep.subr.mxu0 0.0
        %432 = vmatpush1.msra.mxu0 0.0
        %433 = vmatprep.subr.mxu0 0.0
        %434 = vmatpush1.msra.mxu0 0.0
        %435 = vmatprep.mubr.f32.mxu0 0.0
        %436 = vmatmul.mubr.f32.gmra.mrb[0].mxu0 %v220
        %v437 = vpop.f32.mrb[0].mxu0
        %v438 = vadd.f32 %v216, %v437
        %v439 = vpop.f32.mrb[0].mxu0
        %440 = vdwg.mxu0
        %s441 = scalar_lea.vmem %s206, 16 [#allocation5]
        %442 = vst.msk [vmem:[%s441] sm:$0xff] %vm218, %v438
        %s443 = scalar_lea.vmem %s184, 48 [#allocation2]
        %v444 = vld [vmem:[%s443] sm:$0xff]
        %v445 = vld [vmem:[%s443 + $0x8] sm:$0xff]
        %446 = vmatprep.subr.mxu0 0.0
        %447 = vmatpush1.msra.mxu0 %v444
        %448 = vmatprep.subr.mxu0 0.0
        %449 = vmatpush1.msra.mxu0 %v445
        %450 = vmatprep.subr.mxu0 0.0
        %451 = vmatpush1.msra.mxu0 0.0
        %452 = vmatprep.subr.mxu0 0.0
        %453 = vmatpush1.msra.mxu0 0.0
        %454 = vmatprep.subr.mxu0 0.0
        %455 = vmatpush1.msra.mxu0 0.0
        %456 = vmatprep.subr.mxu0 0.0
        %457 = vmatpush1.msra.mxu0 0.0
        %458 = vmatprep.subr.mxu0 0.0
        %459 = vmatpush1.msra.mxu0 0.0
        %460 = vmatprep.subr.mxu0 0.0
        %461 = vmatpush1.msra.mxu0 0.0
        %462 = vmatprep.subr.mxu0 0.0
        %463 = vmatpush1.msra.mxu0 0.0
        %464 = vmatprep.subr.mxu0 0.0
        %465 = vmatpush1.msra.mxu0 0.0
        %466 = vmatprep.subr.mxu0 0.0
        %467 = vmatpush1.msra.mxu0 0.0
        %468 = vmatprep.subr.mxu0 0.0
        %469 = vmatpush1.msra.mxu0 0.0
        %470 = vmatprep.subr.mxu0 0.0
        %471 = vmatpush1.msra.mxu0 0.0
        %472 = vmatprep.subr.mxu0 0.0
        %473 = vmatpush1.msra.mxu0 0.0
        %474 = vmatprep.subr.mxu0 0.0
        %475 = vmatpush1.msra.mxu0 0.0
        %476 = vmatprep.subr.mxu0 0.0
        %477 = vmatpush1.msra.mxu0 0.0
        %478 = vmatprep.subr.mxu0 0.0
        %479 = vmatpush1.msra.mxu0 0.0
        %480 = vmatprep.subr.mxu0 0.0
        %481 = vmatpush1.msra.mxu0 0.0
        %482 = vmatprep.subr.mxu0 0.0
        %483 = vmatpush1.msra.mxu0 0.0
        %484 = vmatprep.subr.mxu0 0.0
        %485 = vmatpush1.msra.mxu0 0.0
        %486 = vmatprep.subr.mxu0 0.0
        %487 = vmatpush1.msra.mxu0 0.0
        %488 = vmatprep.subr.mxu0 0.0
        %489 = vmatpush1.msra.mxu0 0.0
        %490 = vmatprep.subr.mxu0 0.0
        %491 = vmatpush1.msra.mxu0 0.0
        %492 = vmatprep.subr.mxu0 0.0
        %493 = vmatpush1.msra.mxu0 0.0
        %494 = vmatprep.subr.mxu0 0.0
        %495 = vmatpush1.msra.mxu0 0.0
        %496 = vmatprep.subr.mxu0 0.0
        %497 = vmatpush1.msra.mxu0 0.0
        %498 = vmatprep.subr.mxu0 0.0
        %499 = vmatpush1.msra.mxu0 0.0
        %500 = vmatprep.subr.mxu0 0.0
        %501 = vmatpush1.msra.mxu0 0.0
        %502 = vmatprep.subr.mxu0 0.0
        %503 = vmatpush1.msra.mxu0 0.0
        %504 = vmatprep.subr.mxu0 0.0
        %505 = vmatpush1.msra.mxu0 0.0
        %506 = vmatprep.subr.mxu0 0.0
        %507 = vmatpush1.msra.mxu0 0.0
        %508 = vmatprep.subr.mxu0 0.0
        %509 = vmatpush1.msra.mxu0 0.0
        %510 = vmatprep.mubr.f32.mxu0 0.0
        %511 = vmatmul.mubr.f32.gmra.mrb[0].mxu0 %v220
        %v512 = vpop.f32.mrb[0].mxu0
        %v513 = vadd.f32 %v216, %v512
        %v514 = vpop.f32.mrb[0].mxu0
        %515 = vdwg.mxu0
        %s516 = scalar_lea.vmem %s206, 24 [#allocation5]
        %517 = vst.msk [vmem:[%s516] sm:$0xff] %vm218, %v513
        %s518 = sand.u32 %s112, 1
        %s519 = scalar_lea.sflag [#allocation4], %s518
        %s520 = sand.u32 %s112, 1
        %s521 = smul.addr %s520, 32
        %s522 = scalar_lea.vmem [#allocation5], %s521
        // Predicated region
        $region37: #{tpu_custom_call.1} parent=31 // pred_check
          %p523 = pneg %p122
        $region38: #{tpu_custom_call.1} parent=31 // pred_check_branch
          %525 = sbr.rel (%p523) target = $region40
        $region39: #{tpu_custom_call.1} parent=31 // pred_region
          %s526 = smul.u32 4, %s24
          %s528 = ssub.s32 512, 512
          %529 = vsyncadd %s519, %s528
          %s530 = sadd.s32 %s25, %s526
          %s531 = smul.addr %s530, 128
          %s532 = scalar_lea.hbm %s3, %s531
          %s533 = sshll.u32 %s522, 4
          %s534 = int_to_ptr.vmem [resolvable:$true] %s533
          %539 = dma.vmem_to_hbm [thread:$0]  %s534, 512, %s532, %s519, 128, 128, 8
        $region40: #{tpu_custom_call.1} parent=31 // pred_fallthru
          _
      $region32: #{tpu_custom_call.1} parent=5 // pred_fallthru
        _
      %p540 = scmp.le.s32.totalorder 2, %s15
      // Predicated region
      $region41: #{tpu_custom_call.1} parent=5 // pred_check
        %p541 = pneg %p540
      $region42: #{tpu_custom_call.1} parent=5 // pred_check_branch
        %543 = sbr.rel (%p541) target = $region44
      $region43: #{tpu_custom_call.1} parent=5 // pred_region
        %s544 = ssub.s32 %s15, 2
        // Predicated region
        $region45: #{tpu_custom_call.1} parent=43 // pred_check
          %p545 = pneg %p128
        $region46: #{tpu_custom_call.1} parent=43 // pred_check_branch
          %547 = sbr.rel (%p545) target = $region48
        $region47: #{tpu_custom_call.1} parent=43 // pred_region
          %s548 = sand.u32 %s113, 1
          %s549 = scalar_lea.sflag [#allocation4], %s548
          %s550 = sand.u32 %s113, 1
          %s551 = smul.addr %s550, 32
          %s552 = scalar_lea.vmem [#allocation5], %s551
          %553 = dma.done %s549, 512
        $region48: #{tpu_custom_call.1} parent=43 // pred_fallthru
          _
      $region44: #{tpu_custom_call.1} parent=5 // pred_fallthru
        _
    $region6: #{tpu_custom_call.1} parent=1 // loop_footer
      %s19 = sadd.s32 1, %s15
    $region7: #{tpu_custom_call.1} parent=1 // loop_footer_branch
      %14 = sbr.rel target = $region3
    $region8: #{tpu_custom_call.1} parent=1 // loop_exit
      _
    %554 = vsyncpa [#allocation3], 1
    %s555 = scalar_lea.sflag [#allocation3], 1
    %556 = vsyncpa %s555, 1
    %557 = vsyncpa [#allocation4], 1
    %s558 = scalar_lea.sflag [#allocation4], 1
    %559 = vsyncpa %s558, 1

</llo_original>
